<compile_context>
chip_gen: v6e
topology: v6e:2x2x1
jax: 0.10.0
libtpu: 0.0.40
codegen_flags: <defaults>
</compile_context>

<pallas_src>
import functools
import math

import jax
import jax.numpy as jnp
from jax import lax
from jax.experimental import pallas as pl
from jax.experimental.pallas import tpu as pltpu


# ----------------------------- helpers --------------------------------------

def _pick_tile(size, preferred, align):
    """Largest `align`-multiple divisor of `size` that is <= preferred.

    Small dims (<= preferred) use the full extent (always a legal block).
    """
    if size <= preferred:
        return size
    start = (preferred // align) * align
    for t in range(start, 0, -align):
        if size % t == 0:
            return t
    # No aligned divisor exists; full extent is the only legal block.
    return size


def _vmem_limit(working_set_bytes):
    """Scoped-VMEM budget derived from the actual tile bytes (+2x headroom)."""
    return int(min(max(2 * working_set_bytes, 16 * 1024 * 1024),
                   48 * 1024 * 1024))  # stays safe on v7x's 64 MiB physical VMEM


# ----------------------------- matmul kernel --------------------------------

def _matmul_bias_kernel(x_ref, w_ref, b_ref, o_ref, acc_ref):
    """(TM,TK)@(TK,TN) with bf16 operands, f32 accumulator, bias on last K step."""
    @pl.when(pl.program_id(2) == 0)
    def _():
        acc_ref[...] = jnp.zeros(acc_ref.shape, acc_ref.dtype)

    acc_ref[...] += jnp.dot(x_ref[...], w_ref[...],
                            preferred_element_type=jnp.float32)

    @pl.when(pl.program_id(2) == pl.num_programs(2) - 1)
    def _():
        o_ref[...] = (acc_ref[...] + b_ref[...].astype(jnp.float32)).astype(o_ref.dtype)


def matmul_bias_pallas(x, w, b=None, *, tm=256, tn=256, tk=512):
    """x:[M,K] @ w:[K,N] (+ b:[N]); bf16 MXU operands, f32 accumulation."""
    M, K = x.shape
    K2, N = w.shape
    assert K == K2, (K, K2)
    out_dtype = x.dtype
    xb = x.astype(jnp.bfloat16)
    wb = w.astype(jnp.bfloat16)
    bf = (jnp.zeros((N,), jnp.float32) if b is None else b.astype(jnp.float32))
    bf = bf.reshape(1, N)

    TM = _pick_tile(M, tm, 8)
    TN = _pick_tile(N, tn, 128)
    TK = _pick_tile(K, tk, 128)
    grid = (M // TM, N // TN, K // TK)

    working_set = (2 * (TM * TK + TK * TN) * 2      # bf16 inputs, double-buffered
                   + 2 * TN * 4                     # bias
                   + 2 * TM * TN * out_dtype.itemsize if hasattr(out_dtype, "itemsize")
                   else 2 * TM * TN * 4)
    working_set = (2 * (TM * TK + TK * TN) * 2 + 2 * TN * 4
                   + 2 * TM * TN * 4 + TM * TN * 4)  # + out dbl-buf + f32 acc

    return pl.pallas_call(
        _matmul_bias_kernel,
        out_shape=jax.ShapeDtypeStruct((M, N), out_dtype),
        grid_spec=pltpu.PrefetchScalarGridSpec(
            num_scalar_prefetch=0,
            grid=grid,
            in_specs=[
                pl.BlockSpec((TM, TK), lambda i, j, k: (i, k)),
                pl.BlockSpec((TK, TN), lambda i, j, k: (k, j)),
                pl.BlockSpec((1, TN), lambda i, j, k: (0, j)),
            ],
            out_specs=pl.BlockSpec((TM, TN), lambda i, j, k: (i, j)),
            scratch_shapes=[pltpu.VMEM((TM, TN), jnp.float32)],
        ),
        compiler_params=pltpu.CompilerParams(
            dimension_semantics=("parallel", "parallel", "arbitrary"),
            vmem_limit_bytes=_vmem_limit(working_set),
        ),
    )(xb, wb, bf)


# ----------------------------- flash attention kernel -----------------------

def _flash_attn_kernel(q_ref, k_ref, v_ref, o_ref, m_sc, l_sc, acc_sc, *, scale):
    """Online-softmax attention for one (batch, head, q-block); KV axis is grid axis 3."""
    kv_i = pl.program_id(3)

    @pl.when(kv_i == 0)
    def _():
        m_sc[...] = jnp.full(m_sc.shape, -jnp.inf, m_sc.dtype)
        l_sc[...] = jnp.zeros(l_sc.shape, l_sc.dtype)
        acc_sc[...] = jnp.zeros(acc_sc.shape, acc_sc.dtype)

    # Fold softmax scale into Q (N*Dh mul instead of N*N), bf16 MXU operands.
    q = (q_ref[0] * scale).astype(jnp.bfloat16)          # (TQ, Dh)
    k = k_ref[0].astype(jnp.bfloat16)                    # (TKV, Dh)
    s = lax.dot_general(q, k, (((1,), (1,)), ((), ())),
                        preferred_element_type=jnp.float32)  # (TQ, TKV), f32

    m_prev = m_sc[...]
    m_new = jnp.maximum(m_prev, jnp.max(s, axis=-1, keepdims=True))
    alpha = jnp.exp(m_prev - m_new)
    p = jnp.exp(s - m_new)                                # f32 softmax math
    l_sc[...] = alpha * l_sc[...] + jnp.sum(p, axis=-1, keepdims=True)
    v = v_ref[0].astype(jnp.bfloat16)
    acc_sc[...] = alpha * acc_sc[...] + jnp.dot(
        p.astype(jnp.bfloat16), v, preferred_element_type=jnp.float32)
    m_sc[...] = m_new

    @pl.when(kv_i == pl.num_programs(3) - 1)
    def _():
        inv_l = pl.reciprocal(l_sc[...], approx=True)     # EUP-slot reciprocal
        o_ref[0] = (acc_sc[...] * inv_l).astype(o_ref.dtype)


def flash_attention_pallas(qkv, *, B, N, H, Dh, scale, out_dtype):
    """qkv: (B, N, 3*H*Dh) packed to_qkv output.

    Head split and merge happen entirely in BlockSpec index_maps; output is
    written directly as (B, N, H*Dh) ('b h n d -> b n (h d)').
    """
    inner = H * Dh
    TQ = _pick_tile(N, 256, 8)
    TKV = _pick_tile(N, 512, 128)
    grid = (B, H, N // TQ, N // TKV)

    working_set = (2 * TQ * Dh * 4            # q blocks (dbl-buffered)
                   + 2 * 2 * TKV * Dh * 4     # k, v blocks
                   + 2 * TQ * Dh * 4          # out blocks
                   + TQ * Dh * 4 + 2 * TQ * 128 * 4)  # acc + m/l (lane-padded)

    return pl.pallas_call(
        functools.partial(_flash_attn_kernel, scale=scale),
        out_shape=jax.ShapeDtypeStruct((B, N, inner), out_dtype),
        grid_spec=pltpu.PrefetchScalarGridSpec(
            num_scalar_prefetch=0,
            grid=grid,
            in_specs=[
                # q head h lives at columns [h*Dh, (h+1)*Dh)
                pl.BlockSpec((1, TQ, Dh), lambda b, h, qi, ki: (b, qi, h)),
                # k head h at [inner + h*Dh, ...)
                pl.BlockSpec((1, TKV, Dh), lambda b, h, qi, ki: (b, ki, H + h)),
                # v head h at [2*inner + h*Dh, ...)
                pl.BlockSpec((1, TKV, Dh), lambda b, h, qi, ki: (b, ki, 2 * H + h)),
            ],
            out_specs=pl.BlockSpec((1, TQ, Dh), lambda b, h, qi, ki: (b, qi, h)),
            scratch_shapes=[
                pltpu.VMEM((TQ, 1), jnp.float32),   # running max m
                pltpu.VMEM((TQ, 1), jnp.float32),   # running denom l
                pltpu.VMEM((TQ, Dh), jnp.float32),  # output accumulator
            ],
        ),
        compiler_params=pltpu.CompilerParams(
            dimension_semantics=("parallel", "parallel", "parallel", "arbitrary"),
            vmem_limit_bytes=_vmem_limit(working_set),
        ),
    )(qkv, qkv, qkv)


# ----------------------------- attention-map kernel (hook path) -------------

def _attention_map_kernel(q_ref, k_ref, o_ref, *, scale):
    # Exact (non-approx) softmax for the user-visible map; f32 throughout.
    q = q_ref[0].astype(jnp.float32) * scale
    k = k_ref[0].astype(jnp.float32)
    s = lax.dot_general(q, k, (((1,), (1,)), ((), ())),
                        preferred_element_type=jnp.float32)
    m = jnp.max(s, axis=-1, keepdims=True)
    p = jnp.exp(s - m)
    o_ref[0, 0] = (p / jnp.sum(p, axis=-1, keepdims=True)).astype(o_ref.dtype)


def attention_map_pallas(qkv, *, B, N, H, Dh, scale):
    """Materializes softmax(q k^T * scale) as (B, H, N, N). Hook/debug path only.

    Note: holds one (N, N) block in VMEM per (b, h) step; fine for moderate N.
    """
    working_set = 2 * (2 * N * Dh * 4) + 2 * N * N * 4 + 2 * N * N * 4
    return pl.pallas_call(
        functools.partial(_attention_map_kernel, scale=scale),
        out_shape=jax.ShapeDtypeStruct((B, H, N, N), jnp.float32),
        grid_spec=pltpu.PrefetchScalarGridSpec(
            num_scalar_prefetch=0,
            grid=(B, H),
            in_specs=[
                pl.BlockSpec((1, N, Dh), lambda b, h: (b, 0, h)),
                pl.BlockSpec((1, N, Dh), lambda b, h: (b, 0, H + h)),
            ],
            out_specs=pl.BlockSpec((1, 1, N, N), lambda b, h: (b, h, 0, 0)),
        ),
        compiler_params=pltpu.CompilerParams(
            dimension_semantics=("parallel", "parallel"),
            vmem_limit_bytes=_vmem_limit(working_set),
        ),
    )(qkv, qkv)


# ----------------------------- module ---------------------------------------

class AttentionPallas:
    """JAX/Pallas port of Attention(dim, heads, dim_head, dropout).

    forward(x) -> (to_out(attn @ v rearranged), attention_map)
    attention_map is None unless register_hook=True (matches the torch module).
    """

    def __init__(self, dim=512, heads=8, dim_head=512 // 8, dropout=0.1, *, key):
        inner_dim = dim_head * heads
        self.dim = dim
        self.heads = heads
        self.dim_head = dim_head
        self.inner_dim = inner_dim
        self.scale = dim_head ** (-0.5)
        self.project_out = not (heads == 1 and dim_head == dim)
        self.dropout = dropout
        k1, k2, k3 = jax.random.split(key, 3)
        bound_qkv = 1.0 / math.sqrt(dim)
        # Stored as (in, out): x @ W here == x @ W.T with torch's (out, in) layout.
        self.w_qkv = jax.random.uniform(k1, (dim, inner_dim * 3), jnp.float32,
                                        -bound_qkv, bound_qkv)
        if self.project_out:
            bound_out = 1.0 / math.sqrt(inner_dim)
            self.w_out = jax.random.uniform(k2, (inner_dim, dim), jnp.float32,
                                            -bound_out, bound_out)
            self.b_out = jax.random.uniform(k3, (dim,), jnp.float32,
                                            -bound_out, bound_out)
        else:
            self.w_out, self.b_out = None, None
        self.attention_map = None
        self.attn_gradients = None

    # ---- internals ----
    def _qkv(self, x):
        B, N, _ = x.shape
        qkv = matmul_bias_pallas(x.reshape(B * N, self.dim), self.w_qkv)  # (B*N, 3*inner)
        return qkv.reshape(B, N, 3 * self.inner_dim), B, N

    # ---- public API mirroring the torch module ----
    def __call__(self, x, register_hook=False):
        qkv, B, N = self._qkv(x)
        out = flash_attention_pallas(
            qkv, B=B, N=N, H=self.heads, Dh=self.dim_head,
            scale=self.scale, out_dtype=x.dtype)                          # (B, N, inner)
        if register_hook:
            # save_attention_map: materialized only on demand so the fast path
            # never writes the (N, N) matrix to HBM.
            self.attention_map = attention_map_pallas(
                qkv, B=B, N=N, H=self.heads, Dh=self.dim_head, scale=self.scale)
        else:
            self.attention_map = None
        if self.project_out:
            out = matmul_bias_pallas(out.reshape(B * N, self.inner_dim),
                                     self.w_out, self.b_out)
            # TODO(synk): nn.Dropout(p) is eval-mode identity here; training-mode
            # dropout would use pltpu.prng_seed/prng_random_bits inside this kernel.
        out = out.reshape(B, N, -1)
        return out, self.attention_map

    def get_self_attention(self, x):
        qkv, B, N = self._qkv(x)
        return attention_map_pallas(qkv, B=B, N=N, H=self.heads,
                                    Dh=self.dim_head, scale=self.scale)

    def get_attention_map(self):
        return self.attention_map

    def save_attn_gradients(self, g):
        self.attn_gradients = g

    def get_attn_gradients(self):
        return self.attn_gradients


# ----------------------------- reference (pure JAX, f32) ---------------------

def _attention_ref(x, module):
    B, N, _ = x.shape
    H, Dh = module.heads, module.dim_head
    inner = module.inner_dim
    qkv = x.reshape(B * N, module.dim) @ module.w_qkv
    qkv = qkv.reshape(B, N, 3 * inner)
    q, k, v = jnp.split(qkv, 3, axis=-1)

    def to_heads(t):
        return t.reshape(B, N, H, Dh).transpose(0, 2, 1, 3)

    q, k, v = to_heads(q), to_heads(k), to_heads(v)
    dots = jnp.einsum('bhid,bhjd->bhij', q, k) * module.scale
    attn = jax.nn.softmax(dots, axis=-1)
    out = jnp.einsum('bhij,bhjd->bhid', attn, v)
    out = out.transpose(0, 2, 1, 3).reshape(B, N, inner)
    if module.project_out:
        out = out.reshape(B * N, inner) @ module.w_out + module.b_out
        out = out.reshape(B, N, module.dim)
    return out, attn


# ----------------------------- main ------------------------------------------

if __name__ == "__main__":
    key = jax.random.PRNGKey(0)
    k_param, k_x = jax.random.split(key)

    # Small but lane-friendly shapes: dim and dim_head are multiples of 128 so
    # every hot kernel output's last dim is lane-dense.
    batch, seq = 2, 8
    dim, heads, dim_head = 256, 2, 128

    module = AttentionPallas(dim=dim, heads=heads, dim_head=dim_head,
                             dropout=0.1, key=k_param)
    x = jax.random.normal(k_x, (batch, seq, dim), jnp.float32)

    out, attn_map = module(x, register_hook=False)
    out = jax.block_until_ready(out)
    assert attn_map is None
    assert out.shape == (batch, seq, dim), out.shape

    out_ref, attn_ref = _attention_ref(x, module)
    # bf16 MXU operands (f32 accumulate) vs. f32 reference -> modest tolerance.
    err = float(jnp.max(jnp.abs(out - out_ref)))
    assert jnp.allclose(out, out_ref, atol=2e-2, rtol=2e-2), err

    # register_hook path (attention map kernel) + get_self_attention.
    out2, attn_map2 = module(x, register_hook=True)
    attn_map2 = jax.block_until_ready(attn_map2)
    assert attn_map2.shape == (batch, heads, seq, seq), attn_map2.shape
    assert jnp.allclose(attn_map2, attn_ref, atol=1e-2, rtol=1e-2), (
        float(jnp.max(jnp.abs(attn_map2 - attn_ref))))
    attn_self = jax.block_until_ready(module.get_self_attention(x))
    assert jnp.allclose(attn_self, attn_ref, atol=1e-2, rtol=1e-2)

    print("KERNEL_OK")
</pallas_src>

<mosaic_0001>
module attributes {stable_mosaic.version = 11 : i64} {
  func.func @_matmul_bias_kernel(%arg0: i32, %arg1: i32, %arg2: i32, %arg3: memref<16x256xbf16, #tpu.memory_space<vmem>>, %arg4: memref<256x256xbf16, #tpu.memory_space<vmem>>, %arg5: memref<1x256xf32, #tpu.memory_space<vmem>>, %arg6: memref<16x256xf32, #tpu.memory_space<vmem>>, %arg7: memref<16x256xf32, #tpu.memory_space<vmem>>) attributes {dimension_semantics = [#tpu.dimension_semantics<parallel>, #tpu.dimension_semantics<parallel>, #tpu.dimension_semantics<arbitrary>], iteration_bounds = array<i64: 1, 3, 1>, scalar_prefetch = 0 : i64, scratch_operands = 1 : i64, tpu.core_type = #tpu.core_type<tc>, window_params = [{transform_indices = @transform_0, window_bounds = array<i64: 16, 256>}, {transform_indices = @transform_1, window_bounds = array<i64: 256, 256>}, {transform_indices = @transform_2, window_bounds = array<i64: 1, 256>}, {transform_indices = @transform_3, window_bounds = array<i64: 16, 256>}]} {
    %c0_i32 = arith.constant 0 : i32
    %0 = arith.cmpi eq, %arg2, %c0_i32 : i32
    %1 = arith.extui %0 : i1 to i32
    %c0_i32_0 = arith.constant 0 : i32
    %2 = arith.cmpi ne, %1, %c0_i32_0 : i32
    scf.if %2 {
      %cst_10 = arith.constant 0.000000e+00 : f32
      %12 = vector.broadcast %cst_10 : f32 to vector<16x256xf32>
      %c0_11 = arith.constant 0 : index
      %c0_12 = arith.constant 0 : index
      %13 = vector.load %arg7[%c0_11, %c0_12] : memref<16x256xf32, #tpu.memory_space<vmem>>, vector<16x256xf32>
      tpu.vector_store %arg7[%c0_11, %c0_12], %12 {strides = array<i32>} : memref<16x256xf32, #tpu.memory_space<vmem>>, vector<16x256xf32>,
    } else {
    }
    %c0 = arith.constant 0 : index
    %c0_1 = arith.constant 0 : index
    %3 = vector.load %arg7[%c0, %c0_1] : memref<16x256xf32, #tpu.memory_space<vmem>>, vector<16x256xf32>
    %c0_2 = arith.constant 0 : index
    %c0_3 = arith.constant 0 : index
    %4 = vector.load %arg3[%c0_2, %c0_3] : memref<16x256xbf16, #tpu.memory_space<vmem>>, vector<16x256xbf16>
    %c0_4 = arith.constant 0 : index
    %c0_5 = arith.constant 0 : index
    %5 = vector.load %arg4[%c0_4, %c0_5] : memref<256x256xbf16, #tpu.memory_space<vmem>>, vector<256x256xbf16>
    %cst = arith.constant dense<0.000000e+00> : vector<16x256xf32>
    %6 = tpu.matmul %4, %5, %cst {dimension_numbers = #tpu.dot_dimension_numbers<[1], [0], [0], [1], [0, 0, 1, 1], [], []>} : vector<16x256xbf16>, vector<256x256xbf16>, vector<16x256xf32> -> vector<16x256xf32>
    %7 = arith.addf %3, %6 : vector<16x256xf32>
    %c0_6 = arith.constant 0 : index
    %c0_7 = arith.constant 0 : index
    %8 = vector.load %arg7[%c0_6, %c0_7] : memref<16x256xf32, #tpu.memory_space<vmem>>, vector<16x256xf32>
    tpu.vector_store %arg7[%c0_6, %c0_7], %7 {strides = array<i32>} : memref<16x256xf32, #tpu.memory_space<vmem>>, vector<16x256xf32>,
    %c0_i32_8 = arith.constant 0 : i32
    %9 = arith.cmpi eq, %arg2, %c0_i32_8 : i32
    %10 = arith.extui %9 : i1 to i32
    %c0_i32_9 = arith.constant 0 : i32
    %11 = arith.cmpi ne, %10, %c0_i32_9 : i32
    scf.if %11 {
      %c0_10 = arith.constant 0 : index
      %c0_11 = arith.constant 0 : index
      %12 = vector.load %arg7[%c0_10, %c0_11] : memref<16x256xf32, #tpu.memory_space<vmem>>, vector<16x256xf32>
      %c0_12 = arith.constant 0 : index
      %c0_13 = arith.constant 0 : index
      %13 = vector.load %arg5[%c0_12, %c0_13] : memref<1x256xf32, #tpu.memory_space<vmem>>, vector<1x256xf32>
      %14 = vector.broadcast %13 : vector<1x256xf32> to vector<16x256xf32>
      %15 = arith.addf %12, %14 : vector<16x256xf32>
      %c0_14 = arith.constant 0 : index
      %c0_15 = arith.constant 0 : index
      %16 = vector.load %arg6[%c0_14, %c0_15] : memref<16x256xf32, #tpu.memory_space<vmem>>, vector<16x256xf32>
      tpu.vector_store %arg6[%c0_14, %c0_15], %15 {strides = array<i32>} : memref<16x256xf32, #tpu.memory_space<vmem>>, vector<16x256xf32>,
    } else {
    }
    return
  }
  func.func @transform_0(%arg0: i32, %arg1: i32, %arg2: i32) -> (i32, i32) {
    %c0_i32 = arith.constant 0 : i32
    return %arg0, %arg2 : i32, i32
  }
  func.func @transform_1(%arg0: i32, %arg1: i32, %arg2: i32) -> (i32, i32) {
    %c0_i32 = arith.constant 0 : i32
    return %arg2, %arg1 : i32, i32
  }
  func.func @transform_2(%arg0: i32, %arg1: i32, %arg2: i32) -> (i32, i32) {
    %c0_i32 = arith.constant 0 : i32
    %c0_i32_0 = arith.constant 0 : i32
    return %c0_i32, %arg1 : i32, i32
  }
  func.func @transform_3(%arg0: i32, %arg1: i32, %arg2: i32) -> (i32, i32) {
    %c0_i32 = arith.constant 0 : i32
    return %arg0, %arg1 : i32, i32
  }
}

</mosaic_0001>

<llo_original>
// kernel: tpu_custom_call.1
$region0: #{tpu_custom_call.1}
  #allocation0 [shape = 'u32[]', space=smem, size = 0x4, offset = 0x4, fixed_abs, tag = 'smem constant byte address 0x4 - core index']
  #allocation1 [shape = 'u32[144,128]{1,0:T(1,128)}', space=vmem, size = 0x12000, scoped, tag = 'internal scratch']
  #allocation2 [shape = 'f32[16,256]{1,0:T(8,128)}', space=vmem, size = 0x4000, scoped, tag = 'scratch operand']
  %s0 = inlined_call_operand.hbm [shape: bf16[16,256], index: 0, kind: input, shape index: {}]
  %s1 = inlined_call_operand.hbm [shape: bf16[256,768], index: 1, kind: input, shape index: {}]
  %s2 = inlined_call_operand.hbm [shape: f32[1,768], index: 2, kind: input, shape index: {}]
  %s3 = inlined_call_operand.hbm [shape: f32[16,768], index: 3, kind: output, shape index: {}]
  %s4 = sld [smem:[#allocation0]]
  $region65: #{tpu_custom_call.1} parent=0
    _
  %s6 = ssub.s32 1, %s4
  %s7 = scalar_select 0, %s6, %s4
  $region1: #{tpu_custom_call.1} parent=0
    #allocation3 [shape = 'u8[8192]{0}', space=vmem, size = 0x2000, scoped, tag = 'input window, operand 0, single buffered']
    #allocation4 [shape = 's32[2]{0}', space=sflag, size = 0x8, scoped, tag = 'scoped memory for tpu_custom_call.1']
    #allocation5 [shape = 's32[2]{0}', space=sflag, size = 0x8, scoped, tag = 'scoped memory for tpu_custom_call.1']
    #allocation6 [shape = 'u8[262144]{0}', space=vmem, size = 0x40000, scoped, tag = 'input window, operand 1']
    #allocation7 [shape = 's32[2]{0}', space=sflag, size = 0x8, scoped, tag = 'scoped memory for tpu_custom_call.1']
    #allocation8 [shape = 'u8[2048]{0}', space=vmem, size = 0x800, scoped, tag = 'input window, operand 2']
    #allocation9 [shape = 'u8[32768]{0}', space=vmem, size = 0x8000, scoped, tag = 'output window, operand 0']
    %8 = vsyncpa [#allocation4], 0
    %9 = vsyncpa [#allocation7], 0
    %s10 = scalar_lea.sflag [#allocation7], 1
    %11 = vsyncpa %s10, 0
    %12 = vsyncpa [#allocation5], 0
    %s13 = scalar_lea.sflag [#allocation5], 1
    %14 = vsyncpa %s13, 0
    loop: start=0, step=1, limit=5
    $region2: #{tpu_custom_call.1} parent=1 // loop_pre_header
      _
    $region3: #{tpu_custom_call.1} parent=1 // loop_header
      %s16 = sphi 0, %s20
      %p17 = scmp.ge.s32.totalorder %s16, 5
      %s23 = sphi 0, %s42
      %s24 = sphi 0, %s38
      %s25 = sphi 0, %s34
      %s26 = sphi 0, %s23
      %s27 = sphi 0, %s24
      %s28 = sphi 0, %s25
      %s29 = sphi 0, %s26
      %s30 = sphi 0, %s27
      %s31 = sphi 0, %s28
      %s47 = sphi 0, %s49
      %s50 = sphi 0, %s47
      %s51 = sphi 0, %s50
      %s67 = sphi 0, %s51
      %s75 = sphi 0, %s77
      %s78 = sphi 0, %s75
      %s79 = sphi 0, %s78
      %s95 = sphi 0, %s79
      %s101 = sphi 0, %s103
      %s104 = sphi 0, %s101
      %s105 = sphi 0, %s104
      %s121 = sphi 0, %s105
      %s129 = sphi 0, %s131
      %s132 = sphi 0, %s129
      %s133 = sphi 0, %s132
      %s149 = sphi 0, %s133
    $region4: #{tpu_custom_call.1} parent=1 // loop_header_branch
      %19 = sbr.rel (%p17) target = $region8
    $region5: #{tpu_custom_call.1} parent=1 // loop_body
      %s21 = ssub.s32 %s16, 1
      %s22 = ssub.s32 %s16, 2
      %s32 = sadd.s32 1, %s25
      %p33 = scmp.ge.s32.totalorder %s32, 1
      %s34 = scalar_select %p33, 0, %s32
      %s35 = sadd.s32 1, %s24
      %s36 = scalar_select %p33, %s35, %s24
      %p37 = scmp.ge.s32.totalorder %s36, 3
      %s38 = scalar_select %p37, 0, %s36
      %s39 = sadd.s32 1, %s23
      %s40 = scalar_select %p37, %s39, %s23
      %p41 = scmp.ge.s32.totalorder %s40, 1
      %s42 = scalar_select %p41, 0, %s40
      %s43 = ssub.s32 %s23, %s42
      %s44 = ssub.s32 %s25, %s34
      %s45 = sor.u32 %s43, %s44
      %p46 = scmp.eq.s32.totalorder %s45, 0
      %s48 = sadd.s32 %s47, 1
      %s49 = scalar_select %p46, %s47, %s48
      %p52 = pneg %p46
      %p53 = scmp.eq.s32.totalorder %s16, 2
      %p54 = por %p52, %p53
      %p55 = scmp.ne.s32.totalorder %s47, %s50
      %p56 = scmp.eq.s32.totalorder %s16, 0
      %p57 = por %p55, %p56
      %p58 = scmp.ne.s32.totalorder %s47, %s50
      %p59 = scmp.eq.s32.totalorder %s21, 2
      %p60 = por %p58, %p59
      %p61 = scmp.ne.s32.totalorder %s50, %s51
      %p62 = scmp.eq.s32.totalorder %s21, 0
      %p63 = por %p61, %p62
      %p64 = scmp.ne.s32.totalorder %s50, %s51
      %p65 = scmp.eq.s32.totalorder %s22, 2
      %p66 = por %p64, %p65
      %p68 = scmp.ne.s32.totalorder %s51, %s67
      %p69 = scmp.eq.s32.totalorder %s22, 0
      %p70 = por %p68, %p69
      %s71 = ssub.s32 %s25, %s34
      %s72 = ssub.s32 %s24, %s38
      %s73 = sor.u32 %s71, %s72
      %p74 = scmp.eq.s32.totalorder %s73, 0
      %s76 = sadd.s32 %s75, 1
      %s77 = scalar_select %p74, %s75, %s76
      %p80 = pneg %p74
      %p81 = scmp.eq.s32.totalorder %s16, 2
      %p82 = por %p80, %p81
      %p83 = scmp.ne.s32.totalorder %s75, %s78
      %p84 = scmp.eq.s32.totalorder %s16, 0
      %p85 = por %p83, %p84
      %p86 = scmp.ne.s32.totalorder %s75, %s78
      %p87 = scmp.eq.s32.totalorder %s21, 2
      %p88 = por %p86, %p87
      %p89 = scmp.ne.s32.totalorder %s78, %s79
      %p90 = scmp.eq.s32.totalorder %s21, 0
      %p91 = por %p89, %p90
      %p92 = scmp.ne.s32.totalorder %s78, %s79
      %p93 = scmp.eq.s32.totalorder %s22, 2
      %p94 = por %p92, %p93
      %p96 = scmp.ne.s32.totalorder %s79, %s95
      %p97 = scmp.eq.s32.totalorder %s22, 0
      %p98 = por %p96, %p97
      %s99 = ssub.s32 %s24, %s38
      %p100 = scmp.eq.s32.totalorder %s99, 0
      %s102 = sadd.s32 %s101, 1
      %s103 = scalar_select %p100, %s101, %s102
      %p106 = pneg %p100
      %p107 = scmp.eq.s32.totalorder %s16, 2
      %p108 = por %p106, %p107
      %p109 = scmp.ne.s32.totalorder %s101, %s104
      %p110 = scmp.eq.s32.totalorder %s16, 0
      %p111 = por %p109, %p110
      %p112 = scmp.ne.s32.totalorder %s101, %s104
      %p113 = scmp.eq.s32.totalorder %s21, 2
      %p114 = por %p112, %p113
      %p115 = scmp.ne.s32.totalorder %s104, %s105
      %p116 = scmp.eq.s32.totalorder %s21, 0
      %p117 = por %p115, %p116
      %p118 = scmp.ne.s32.totalorder %s104, %s105
      %p119 = scmp.eq.s32.totalorder %s22, 2
      %p120 = por %p118, %p119
      %p122 = scmp.ne.s32.totalorder %s105, %s121
      %p123 = scmp.eq.s32.totalorder %s22, 0
      %p124 = por %p122, %p123
      %s125 = ssub.s32 %s23, %s42
      %s126 = ssub.s32 %s24, %s38
      %s127 = sor.u32 %s125, %s126
      %p128 = scmp.eq.s32.totalorder %s127, 0
      %s130 = sadd.s32 %s129, 1
      %s131 = scalar_select %p128, %s129, %s130
      %p134 = pneg %p128
      %p135 = scmp.eq.s32.totalorder %s16, 2
      %p136 = por %p134, %p135
      %p137 = scmp.ne.s32.totalorder %s129, %s132
      %p138 = scmp.eq.s32.totalorder %s16, 0
      %p139 = por %p137, %p138
      %p140 = scmp.ne.s32.totalorder %s129, %s132
      %p141 = scmp.eq.s32.totalorder %s21, 2
      %p142 = por %p140, %p141
      %p143 = scmp.ne.s32.totalorder %s132, %s133
      %p144 = scmp.eq.s32.totalorder %s21, 0
      %p145 = por %p143, %p144
      %p146 = scmp.ne.s32.totalorder %s132, %s133
      %p147 = scmp.eq.s32.totalorder %s22, 2
      %p148 = por %p146, %p147
      %p150 = scmp.ne.s32.totalorder %s133, %s149
      %p151 = scmp.eq.s32.totalorder %s22, 0
      %p152 = por %p150, %p151
      %p153 = scmp.le.s32.totalorder 1, %s16
      %p154 = scmp.lt.s32.totalorder %s16, 4
      %p155 = pnand %p153, %p154
      %p156 = pneg %p155
      // Predicated region
      $region9: #{tpu_custom_call.1} parent=5 // pred_check
        _
      $region10: #{tpu_custom_call.1} parent=5 // pred_check_branch
        %158 = sbr.rel (%p155) target = $region12
      $region11: #{tpu_custom_call.1} parent=5 // pred_region
        %s159 = ssub.s32 %s16, 1
        // Predicated region
        $region13: #{tpu_custom_call.1} parent=11 // pred_check
          %p160 = pneg %p63
        $region14: #{tpu_custom_call.1} parent=11 // pred_check_branch
          %162 = sbr.rel (%p160) target = $region16
        $region15: #{tpu_custom_call.1} parent=11 // pred_region
          %s163 = smul.u32 2, %s26
          %s164 = smul.u32 2, %s28
          %s166 = ssub.s32 256, 256
          %167 = vsyncadd [#allocation4], %s166
          %s168 = smul.addr %s163, 2
          %s169 = sadd.s32 %s164, %s168
          %s170 = smul.addr %s169, 64
          %s171 = scalar_lea.hbm %s0, %s170
          %s172 = sshll.u32 [#allocation3], 4
          %s173 = int_to_ptr.vmem [resolvable:$true] %s172
          %178 = dma.hbm_to_vmem [thread:$0]  %s171, 256, %s173, [#allocation4], 128, 128, 8
        $region16: #{tpu_custom_call.1} parent=11 // pred_fallthru
          _
      $region12: #{tpu_custom_call.1} parent=5 // pred_fallthru
        _
      %p179 = scmp.lt.s32.totalorder %s16, 3
      // Predicated region
      $region17: #{tpu_custom_call.1} parent=5 // pred_check
        %p180 = pneg %p179
      $region18: #{tpu_custom_call.1} parent=5 // pred_check_branch
        %182 = sbr.rel (%p180) target = $region20
      $region19: #{tpu_custom_call.1} parent=5 // pred_region
        // Predicated region
        $region21: #{tpu_custom_call.1} parent=19 // pred_check
          %p183 = pneg %p85
        $region22: #{tpu_custom_call.1} parent=19 // pred_check_branch
          %185 = sbr.rel (%p183) target = $region24
        $region23: #{tpu_custom_call.1} parent=19 // pred_region
          %s186 = sand.u32 %s16, 1
          %s187 = scalar_lea.sflag [#allocation7], %s186
          %s188 = sand.u32 %s75, 1
          %s189 = smul.addr %s188, 256
          %s190 = scalar_lea.vmem [#allocation6], %s189
          %s191 = smul.u32 32, %s25
          %s192 = smul.u32 2, %s24
          %s194 = ssub.s32 4096, 4096
          %195 = vsyncadd %s187, %s194
          %s196 = smul.addr %s191, 6
          %s197 = sadd.s32 %s192, %s196
          %s198 = smul.addr %s197, 64
          %s199 = scalar_lea.hbm %s1, %s198
          %s200 = sshll.u32 %s190, 4
          %s201 = int_to_ptr.vmem [resolvable:$true] %s200
          %206 = dma.hbm_to_vmem [thread:$0]  %s199, 4096, %s201, %s187, 384, 128, 8
        $region24: #{tpu_custom_call.1} parent=19 // pred_fallthru
          _
        // Predicated region
        $region25: #{tpu_custom_call.1} parent=19 // pred_check
          %p207 = pneg %p111
        $region26: #{tpu_custom_call.1} parent=19 // pred_check_branch
          %209 = sbr.rel (%p207) target = $region28
        $region27: #{tpu_custom_call.1} parent=19 // pred_region
          %s210 = sand.u32 %s16, 1
          %s211 = scalar_lea.sflag [#allocation7], %s210
          %s212 = sand.u32 %s101, 1
          %s213 = smul.addr %s212, 2
          %s214 = scalar_lea.vmem [#allocation8], %s213
          %s215 = smul.u32 2, %s24
          %s217 = ssub.s32 32, 32
          %218 = vsyncadd %s211, %s217
          %s219 = smul.addr %s215, 16
          %s220 = scalar_lea.hbm %s2, %s219
          %s222 = sshll.u32 %s214, 4
          %s223 = int_to_ptr.vmem [resolvable:$true] %s222
          %225 = dma.hbm_to_vmem [thread:$0]  %s220, 32, %s223, %s211
        $region28: #{tpu_custom_call.1} parent=19 // pred_fallthru
          _
      $region20: #{tpu_custom_call.1} parent=5 // pred_fallthru
        _
      %p226 = scmp.le.s32.totalorder 1, %s16
      %p227 = scmp.lt.s32.totalorder %s16, 4
      %p228 = pnand %p226, %p227
      %p229 = pneg %p228
      // Predicated region
      $region29: #{tpu_custom_call.1} parent=5 // pred_check
        _
      $region30: #{tpu_custom_call.1} parent=5 // pred_check_branch
        %231 = sbr.rel (%p228) target = $region32
      $region31: #{tpu_custom_call.1} parent=5 // pred_region
        %s232 = ssub.s32 %s16, 1
        // Predicated region
        $region33: #{tpu_custom_call.1} parent=31 // pred_check
          %p233 = pneg %p63
        $region34: #{tpu_custom_call.1} parent=31 // pred_check_branch
          %235 = sbr.rel (%p233) target = $region36
        $region35: #{tpu_custom_call.1} parent=31 // pred_region
          %236 = dma.done [#allocation4], 256
        $region36: #{tpu_custom_call.1} parent=31 // pred_fallthru
          _
        %s237 = sand.u32 %s21, 1
        %s238 = scalar_lea.sflag [#allocation7], %s237
        %s239 = sand.u32 %s78, 1
        %s240 = smul.addr %s239, 256
        %s241 = scalar_lea.vmem [#allocation6], %s240
        // Predicated region
        $region37: #{tpu_custom_call.1} parent=31 // pred_check
          %p242 = pneg %p91
        $region38: #{tpu_custom_call.1} parent=31 // pred_check_branch
          %244 = sbr.rel (%p242) target = $region40
        $region39: #{tpu_custom_call.1} parent=31 // pred_region
          %245 = dma.done %s238, 4096
        $region40: #{tpu_custom_call.1} parent=31 // pred_fallthru
          _
        %s246 = sand.u32 %s21, 1
        %s247 = scalar_lea.sflag [#allocation7], %s246
        %s248 = sand.u32 %s104, 1
        %s249 = smul.addr %s248, 2
        %s250 = scalar_lea.vmem [#allocation8], %s249
        // Predicated region
        $region41: #{tpu_custom_call.1} parent=31 // pred_check
          %p251 = pneg %p117
        $region42: #{tpu_custom_call.1} parent=31 // pred_check_branch
          %253 = sbr.rel (%p251) target = $region44
        $region43: #{tpu_custom_call.1} parent=31 // pred_region
          %254 = dma.done %s247, 32
        $region44: #{tpu_custom_call.1} parent=31 // pred_fallthru
          _
        %p255 = pneg %p63
        %p256 = pneg %p60
        %s257 = sand.u32 %s21, 1
        %s258 = scalar_lea.sflag [#allocation7], %s257
        %s259 = sand.u32 %s78, 1
        %s260 = smul.addr %s259, 256
        %s261 = scalar_lea.vmem [#allocation6], %s260
        %p262 = pneg %p91
        %p263 = pneg %p88
        %s264 = sand.u32 %s21, 1
        %s265 = scalar_lea.sflag [#allocation7], %s264
        %s266 = sand.u32 %s104, 1
        %s267 = smul.addr %s266, 2
        %s268 = scalar_lea.vmem [#allocation8], %s267
        %p269 = pneg %p117
        %p270 = pneg %p114
        %p271 = pneg %p145
        %p272 = pneg %p142
        %s273 = sand.u32 %s132, 1
        %s274 = scalar_lea.sflag [#allocation5], %s273
        %s275 = sand.u32 %s132, 1
        %s276 = smul.addr %s275, 32
        %s277 = scalar_lea.vmem [#allocation9], %s276
        %s278 = smul.u32 2, %s26
        %s279 = smul.u32 2, %s28
        %s280 = smul.u32 32, %s28
        %s281 = smul.u32 2, %s27
        %s282 = smul.u32 2, %s27
        %s283 = smul.u32 2, %s26
        %s284 = smul.u32 2, %s27
        %p285 = scmp.eq.s32.totalorder %s28, 0
        // Predicated region
        $region45: #{tpu_custom_call.1} parent=31 // pred_check
          %p286 = pneg %p285
        $region46: #{tpu_custom_call.1} parent=31 // pred_check_branch
          %288 = sbr.rel (%p286) target = $region48
        $region47: #{tpu_custom_call.1} parent=31 // pred_region
          %289 = vst [vmem:[#allocation2] sm:$0xff] 0.0
          %290 = vst [vmem:[#allocation2 + $0x8] sm:$0xff] 0.0
          %291 = vst [vmem:[#allocation2 + $0x10] sm:$0xff] 0.0
          %292 = vst [vmem:[#allocation2 + $0x18] sm:$0xff] 0.0
        $region48: #{tpu_custom_call.1} parent=31 // pred_fallthru
          _
        %v293 = vld [vmem:[#allocation2] sm:$0xff]
        %v294 = vld [vmem:[#allocation2 + $0x8] sm:$0xff]
        %v295 = vld [vmem:[#allocation2 + $0x10] sm:$0xff]
        %v296 = vld [vmem:[#allocation2 + $0x18] sm:$0xff]
        %v297 = vld [vmem:[#allocation3] sm:$0xff]
        %v298 = vld [vmem:[#allocation3 + $0x8] sm:$0xff]
        %v299 = vld [vmem:[%s241] sm:$0xff]
        %v300 = vld [vmem:[%s241 + $0x8] sm:$0xff]
        %v301 = vld [vmem:[%s241 + $0x10] sm:$0xff]
        %v302 = vld [vmem:[%s241 + $0x18] sm:$0xff]
        %v303 = vld [vmem:[%s241 + $0x20] sm:$0xff]
        %v304 = vld [vmem:[%s241 + $0x28] sm:$0xff]
        %v305 = vld [vmem:[%s241 + $0x30] sm:$0xff]
        %v306 = vld [vmem:[%s241 + $0x38] sm:$0xff]
        %v307 = vld [vmem:[%s241 + $0x40] sm:$0xff]
        %v308 = vld [vmem:[%s241 + $0x48] sm:$0xff]
        %v309 = vld [vmem:[%s241 + $0x50] sm:$0xff]
        %v310 = vld [vmem:[%s241 + $0x58] sm:$0xff]
        %v311 = vld [vmem:[%s241 + $0x60] sm:$0xff]
        %v312 = vld [vmem:[%s241 + $0x68] sm:$0xff]
        %v313 = vld [vmem:[%s241 + $0x70] sm:$0xff]
        %v314 = vld [vmem:[%s241 + $0x78] sm:$0xff]
        %v315 = vld [vmem:[%s241 + $0x80] sm:$0xff]
        %v316 = vld [vmem:[%s241 + $0x88] sm:$0xff]
        %v317 = vld [vmem:[%s241 + $0x90] sm:$0xff]
        %v318 = vld [vmem:[%s241 + $0x98] sm:$0xff]
        %v319 = vld [vmem:[%s241 + $0xa0] sm:$0xff]
        %v320 = vld [vmem:[%s241 + $0xa8] sm:$0xff]
        %v321 = vld [vmem:[%s241 + $0xb0] sm:$0xff]
        %v322 = vld [vmem:[%s241 + $0xb8] sm:$0xff]
        %v323 = vld [vmem:[%s241 + $0xc0] sm:$0xff]
        %v324 = vld [vmem:[%s241 + $0xc8] sm:$0xff]
        %v325 = vld [vmem:[%s241 + $0xd0] sm:$0xff]
        %v326 = vld [vmem:[%s241 + $0xd8] sm:$0xff]
        %v327 = vld [vmem:[%s241 + $0xe0] sm:$0xff]
        %v328 = vld [vmem:[%s241 + $0xe8] sm:$0xff]
        %v329 = vld [vmem:[%s241 + $0xf0] sm:$0xff]
        %v330 = vld [vmem:[%s241 + $0xf8] sm:$0xff]
        %v333 = vunpack.c.l.b16 %v297
        %v334 = vunpack.c.h.b16 %v297
        %v335 = vunpack.c.l.b16 %v298
        %v336 = vunpack.c.h.b16 %v298
        %v337 = vpack.c.b16 %v335, %v333
        %v338 = vpack.c.b16 %v336, %v334
        %v373 = vunpack.c.l.b16 %v299
        %v374 = vunpack.c.h.b16 %v299
        %v375 = vunpack.c.l.b16 %v300
        %v376 = vunpack.c.h.b16 %v300
        %v377 = vunpack.c.l.b16 %v301
        %v378 = vunpack.c.h.b16 %v301
        %v379 = vunpack.c.l.b16 %v302
        %v380 = vunpack.c.h.b16 %v302
        %v381 = vunpack.c.l.b16 %v303
        %v382 = vunpack.c.h.b16 %v303
        %v383 = vunpack.c.l.b16 %v304
        %v384 = vunpack.c.h.b16 %v304
        %v385 = vunpack.c.l.b16 %v305
        %v386 = vunpack.c.h.b16 %v305
        %v387 = vunpack.c.l.b16 %v306
        %v388 = vunpack.c.h.b16 %v306
        %v389 = vunpack.c.l.b16 %v307
        %v390 = vunpack.c.h.b16 %v307
        %v391 = vunpack.c.l.b16 %v308
        %v392 = vunpack.c.h.b16 %v308
        %v393 = vunpack.c.l.b16 %v309
        %v394 = vunpack.c.h.b16 %v309
        %v395 = vunpack.c.l.b16 %v310
        %v396 = vunpack.c.h.b16 %v310
        %v397 = vunpack.c.l.b16 %v311
        %v398 = vunpack.c.h.b16 %v311
        %v399 = vunpack.c.l.b16 %v312
        %v400 = vunpack.c.h.b16 %v312
        %v401 = vunpack.c.l.b16 %v313
        %v402 = vunpack.c.h.b16 %v313
        %v403 = vunpack.c.l.b16 %v314
        %v404 = vunpack.c.h.b16 %v314
        %v405 = vunpack.c.l.b16 %v315
        %v406 = vunpack.c.h.b16 %v315
        %v407 = vunpack.c.l.b16 %v316
        %v408 = vunpack.c.h.b16 %v316
        %v409 = vunpack.c.l.b16 %v317
        %v410 = vunpack.c.h.b16 %v317
        %v411 = vunpack.c.l.b16 %v318
        %v412 = vunpack.c.h.b16 %v318
        %v413 = vunpack.c.l.b16 %v319
        %v414 = vunpack.c.h.b16 %v319
        %v415 = vunpack.c.l.b16 %v320
        %v416 = vunpack.c.h.b16 %v320
        %v417 = vunpack.c.l.b16 %v321
        %v418 = vunpack.c.h.b16 %v321
        %v419 = vunpack.c.l.b16 %v322
        %v420 = vunpack.c.h.b16 %v322
        %v421 = vunpack.c.l.b16 %v323
        %v422 = vunpack.c.h.b16 %v323
        %v423 = vunpack.c.l.b16 %v324
        %v424 = vunpack.c.h.b16 %v324
        %v425 = vunpack.c.l.b16 %v325
        %v426 = vunpack.c.h.b16 %v325
        %v427 = vunpack.c.l.b16 %v326
        %v428 = vunpack.c.h.b16 %v326
        %v429 = vunpack.c.l.b16 %v327
        %v430 = vunpack.c.h.b16 %v327
        %v431 = vunpack.c.l.b16 %v328
        %v432 = vunpack.c.h.b16 %v328
        %v433 = vunpack.c.l.b16 %v329
        %v434 = vunpack.c.h.b16 %v329
        %v435 = vunpack.c.l.b16 %v330
        %v436 = vunpack.c.h.b16 %v330
        %v437 = vpack.c.b16 %v375, %v373
        %v438 = vpack.c.b16 %v376, %v374
        %v439 = vpack.c.b16 %v379, %v377
        %v440 = vpack.c.b16 %v380, %v378
        %v441 = vpack.c.b16 %v383, %v381
        %v442 = vpack.c.b16 %v384, %v382
        %v443 = vpack.c.b16 %v387, %v385
        %v444 = vpack.c.b16 %v388, %v386
        %v445 = vpack.c.b16 %v391, %v389
        %v446 = vpack.c.b16 %v392, %v390
        %v447 = vpack.c.b16 %v395, %v393
        %v448 = vpack.c.b16 %v396, %v394
        %v449 = vpack.c.b16 %v399, %v397
        %v450 = vpack.c.b16 %v400, %v398
        %v451 = vpack.c.b16 %v403, %v401
        %v452 = vpack.c.b16 %v404, %v402
        %v453 = vpack.c.b16 %v407, %v405
        %v454 = vpack.c.b16 %v408, %v406
        %v455 = vpack.c.b16 %v411, %v409
        %v456 = vpack.c.b16 %v412, %v410
        %v457 = vpack.c.b16 %v415, %v413
        %v458 = vpack.c.b16 %v416, %v414
        %v459 = vpack.c.b16 %v419, %v417
        %v460 = vpack.c.b16 %v420, %v418
        %v461 = vpack.c.b16 %v423, %v421
        %v462 = vpack.c.b16 %v424, %v422
        %v463 = vpack.c.b16 %v427, %v425
        %v464 = vpack.c.b16 %v428, %v426
        %v465 = vpack.c.b16 %v431, %v429
        %v466 = vpack.c.b16 %v432, %v430
        %v467 = vpack.c.b16 %v435, %v433
        %v468 = vpack.c.b16 %v436, %v434
        %501 = vmatprep.subr.bf16.mxu0 %v452
        %502 = vmatpush1.bf16.msra.mxu0 %v451
        %503 = vmatprep.subr.bf16.mxu0 %v450
        %504 = vmatpush1.bf16.msra.mxu0 %v449
        %505 = vmatprep.subr.bf16.mxu0 %v448
        %506 = vmatpush1.bf16.msra.mxu0 %v447
        %507 = vmatprep.subr.bf16.mxu0 %v446
        %508 = vmatpush1.bf16.msra.mxu0 %v445
        %509 = vmatprep.subr.bf16.mxu0 %v444
        %510 = vmatpush1.bf16.msra.mxu0 %v443
        %511 = vmatprep.subr.bf16.mxu0 %v442
        %512 = vmatpush1.bf16.msra.mxu0 %v441
        %513 = vmatprep.subr.bf16.mxu0 %v440
        %514 = vmatpush1.bf16.msra.mxu0 %v439
        %515 = vmatprep.subr.bf16.mxu0 %v438
        %516 = vmatpush1.bf16.msra.mxu0 %v437
        %517 = vmatprep.subr.bf16.mxu0 %v468
        %518 = vmatpush2.bf16.msra.mxu0 %v467
        %519 = vmatprep.subr.bf16.mxu0 %v466
        %520 = vmatpush2.bf16.msra.mxu0 %v465
        %521 = vmatprep.subr.bf16.mxu0 %v464
        %522 = vmatpush2.bf16.msra.mxu0 %v463
        %523 = vmatprep.subr.bf16.mxu0 %v462
        %524 = vmatpush2.bf16.msra.mxu0 %v461
        %525 = vmatprep.subr.bf16.mxu0 %v460
        %526 = vmatpush2.bf16.msra.mxu0 %v459
        %527 = vmatprep.subr.bf16.mxu0 %v458
        %528 = vmatpush2.bf16.msra.mxu0 %v457
        %529 = vmatprep.subr.bf16.mxu0 %v456
        %530 = vmatpush2.bf16.msra.mxu0 %v455
        %531 = vmatprep.subr.bf16.mxu0 %v454
        %532 = vmatpush2.bf16.msra.mxu0 %v453
        %533 = vmatprep.mubr.bf16.mxu0 %v338
        %534 = vmatmul.mubr.bf16.gmra.mxu0 %v337
        %v535 = vpop.f32.mrf.mxu0
        %v536 = vadd.f32 0.0, %v535
        %v537 = vpop.f32.mrf.mxu0
        %v538 = vadd.f32 0.0, %v537
        %v539 = vpop.f32.mrf.mxu0
        %v540 = vadd.f32 0.0, %v539
        %v541 = vpop.f32.mrf.mxu0
        %v542 = vadd.f32 0.0, %v541
        %543 = vdwg.mxu0
        %v544 = vadd.f32 %v293, %v536
        %v545 = vadd.f32 %v294, %v538
        %v546 = vadd.f32 %v295, %v540
        %v547 = vadd.f32 %v296, %v542
        %548 = vst [vmem:[#allocation2] sm:$0xff] %v544
        %549 = vst [vmem:[#allocation2 + $0x8] sm:$0xff] %v545
        %550 = vst [vmem:[#allocation2 + $0x10] sm:$0xff] %v546
        %551 = vst [vmem:[#allocation2 + $0x18] sm:$0xff] %v547
        // Predicated region
        $region49: #{tpu_custom_call.1} parent=31 // pred_check
          %p552 = pneg %p285
        $region50: #{tpu_custom_call.1} parent=31 // pred_check_branch
          %554 = sbr.rel (%p552) target = $region52
        $region51: #{tpu_custom_call.1} parent=31 // pred_region
          %v555 = vld [vmem:[#allocation2] sm:$0xff]
          %v556 = vld [vmem:[#allocation2 + $0x8] sm:$0xff]
          %v557 = vld [vmem:[#allocation2 + $0x10] sm:$0xff]
          %v558 = vld [vmem:[#allocation2 + $0x18] sm:$0xff]
          %v559 = vld [vmem:[%s250] sm:$0x3]
          %v561 = vlaneseq
          %v562 = vshrl.u32 %v561, 7
          %v563 = vsub.s32 0, %v562
          %v564 = vrot.slane %v559, %v563
          %v565 = vlaneseq
          %v566 = vshrl.u32 %v565, 7
          %v567 = vsub.s32 1, %v566
          %v568 = vrot.slane %v559, %v567
          %v571 = vadd.f32 %v555, %v564
          %v572 = vadd.f32 %v556, %v568
          %v573 = vadd.f32 %v557, %v564
          %v574 = vadd.f32 %v558, %v568
          %575 = vst [vmem:[%s277] sm:$0xff] %v571
          %576 = vst [vmem:[%s277 + $0x8] sm:$0xff] %v572
          %577 = vst [vmem:[%s277 + $0x10] sm:$0xff] %v573
          %578 = vst [vmem:[%s277 + $0x18] sm:$0xff] %v574
        $region52: #{tpu_custom_call.1} parent=31 // pred_fallthru
          _
        %s579 = sand.u32 %s132, 1
        %s580 = scalar_lea.sflag [#allocation5], %s579
        %s581 = sand.u32 %s132, 1
        %s582 = smul.addr %s581, 32
        %s583 = scalar_lea.vmem [#allocation9], %s582
        // Predicated region
        $region53: #{tpu_custom_call.1} parent=31 // pred_check
          %p584 = pneg %p142
        $region54: #{tpu_custom_call.1} parent=31 // pred_check_branch
          %586 = sbr.rel (%p584) target = $region56
        $region55: #{tpu_custom_call.1} parent=31 // pred_region
          %s587 = smul.u32 2, %s26
          %s588 = smul.u32 2, %s27
          %s590 = ssub.s32 512, 512
          %591 = vsyncadd %s580, %s590
          %s592 = smul.addr %s587, 6
          %s593 = sadd.s32 %s588, %s592
          %s594 = smul.addr %s593, 128
          %s595 = scalar_lea.hbm %s3, %s594
          %s596 = sshll.u32 %s583, 4
          %s597 = int_to_ptr.vmem [resolvable:$true] %s596
          %602 = dma.vmem_to_hbm [thread:$0]  %s597, 512, %s595, %s580, 256, 768, 16
        $region56: #{tpu_custom_call.1} parent=31 // pred_fallthru
          _
      $region32: #{tpu_custom_call.1} parent=5 // pred_fallthru
        _
      %p603 = scmp.le.s32.totalorder 2, %s16
      // Predicated region
      $region57: #{tpu_custom_call.1} parent=5 // pred_check
        %p604 = pneg %p603
      $region58: #{tpu_custom_call.1} parent=5 // pred_check_branch
        %606 = sbr.rel (%p604) target = $region60
      $region59: #{tpu_custom_call.1} parent=5 // pred_region
        %s607 = ssub.s32 %s16, 2
        // Predicated region
        $region61: #{tpu_custom_call.1} parent=59 // pred_check
          %p608 = pneg %p148
        $region62: #{tpu_custom_call.1} parent=59 // pred_check_branch
          %610 = sbr.rel (%p608) target = $region64
        $region63: #{tpu_custom_call.1} parent=59 // pred_region
          %s611 = sand.u32 %s133, 1
          %s612 = scalar_lea.sflag [#allocation5], %s611
          %s613 = sand.u32 %s133, 1
          %s614 = smul.addr %s613, 32
          %s615 = scalar_lea.vmem [#allocation9], %s614
          %616 = dma.done %s612, 512
        $region64: #{tpu_custom_call.1} parent=59 // pred_fallthru
          _
      $region60: #{tpu_custom_call.1} parent=5 // pred_fallthru
        _
    $region6: #{tpu_custom_call.1} parent=1 // loop_footer
      %s20 = sadd.s32 1, %s16
    $region7: #{tpu_custom_call.1} parent=1 // loop_footer_branch
      %15 = sbr.rel target = $region3
    $region8: #{tpu_custom_call.1} parent=1 // loop_exit
      _
    %617 = vsyncpa [#allocation4], 1
    %s618 = scalar_lea.sflag [#allocation4], 1
    %619 = vsyncpa %s618, 1
    %620 = vsyncpa [#allocation7], 1
    %s621 = scalar_lea.sflag [#allocation7], 1
    %622 = vsyncpa %s621, 1
    %623 = vsyncpa [#allocation5], 1
    %s624 = scalar_lea.sflag [#allocation5], 1
    %625 = vsyncpa %s624, 1

</llo_original>
